<compile_context>
chip_gen: v6e
topology: v6e:2x2x1
jax: 0.10.0
libtpu: 0.0.40
codegen_flags: <defaults>
</compile_context>

<pallas_src>
import functools

import jax
import jax.numpy as jnp
import numpy as np
from jax import lax
from jax.experimental import pallas as pl
from jax.experimental.pallas import tpu as pltpu


def _fq_kernel(view_num, num_classes, feat_dim, pids_ref, feat_ref, cls_ref, out_ref):
    """Blocks: pids (TG, V) i32, feat/out (TG, V*D), cls (TG, V*C)."""
    V, C, D = view_num, num_classes, feat_dim
    cls = cls_ref[...].astype(jnp.float32)                 # (TG, V*C)
    col = lax.broadcasted_iota(jnp.int32, (1, C), 1)       # class id per lane

    # --- per-view log-softmax + one-hot gather (logp never materialized) ----
    probs = []
    for v in range(V):
        sv = cls[:, v * C:(v + 1) * C]                     # (TG, C) lane slice
        m = jnp.max(sv, axis=-1, keepdims=True)            # (TG, 1)
        shifted = sv - m
        lse = jnp.log(jnp.sum(jnp.exp(shifted), axis=-1, keepdims=True))
        pid = pids_ref[:, v:v + 1]                         # (TG, 1) int32
        hit = jnp.sum(jnp.where(col == pid, shifted, 0.0), axis=-1, keepdims=True)
        probs.append(hit - lse)                            # (TG, 1)

    # --- softmax across the per-view scalars (tiny (TG, 1) columns) ---------
    gmax = probs[0]
    for v in range(1, V):
        gmax = jnp.maximum(gmax, probs[v])
    expd = [jnp.exp(p - gmax) for p in probs]
    gsum = expd[0]
    for v in range(1, V):
        gsum = gsum + expd[v]
    inv = 1.0 / gsum                                       # one divide per group row
    weights = [e * inv for e in expd]                      # V x (TG, 1) f32

    # --- spread weight v across lanes [v*D, (v+1)*D) ------------------------
    # Descending select chain on a lane iota: a lane in view v is written last
    # at step v, lanes of the final view keep the default.  No concatenate,
    # no integer division -> plain VPU compares/selects, hidden under DMA.
    lane = lax.broadcasted_iota(jnp.int32, (1, V * D), 1)  # (1, V*D)
    w_full = weights[V - 1]
    for v in range(V - 2, -1, -1):
        w_full = jnp.where(lane < (v + 1) * D, weights[v], w_full)

    # --- single full-width scale of the features (f32 math, cast on store) --
    out_ref[...] = (w_full * feat_ref[...]).astype(out_ref.dtype)


def _pad_lanes(x):
    return -(-x // 128) * 128


def _vmem_limits():
    """(vmem_limit_bytes, block_budget_bytes), gated by the TPU generation."""
    cap = None
    try:
        cap = getattr(pltpu.get_tpu_info(), "vmem_capacity_bytes", None)
    except Exception:
        cap = None
    if not cap:
        cap = 64 * 1024 * 1024                       # conservative: v7x per-TC VMEM
    limit = min(64 * 1024 * 1024, (int(cap) * 3) // 4)  # 64 MiB v5e/v6e, 48 MiB v7x
    budget = (limit * 3) // 4                            # headroom for compiler scratch
    return limit, budget


def _pick_tile_groups(g, view_num, d, c, feat_itemsize, cls_itemsize, budget):
    """Largest group tile whose pipeline blocks + f32 intermediates fit `budget`."""
    vd = _pad_lanes(view_num * d)
    vc = _pad_lanes(view_num * c)
    vp = _pad_lanes(view_num)
    # Double-buffered pipeline blocks (feat in + out, cls, pids), lane-padded.
    blocks = 2 * (2 * vd * feat_itemsize + vc * cls_itemsize + vp * 4)
    # Live f32 values inside the kernel (feature value, weights, product and a
    # few class-path temporaries) -- not double-buffered but still resident.
    scratch = (3 * vd + 3 * vc) * 4
    per_group = blocks + scratch
    return max(1, min(g, budget // per_group))


def _align_tile_groups(tg, g):
    """Keep the second-minor block dim 8-aligned unless the block spans the array."""
    tg = max(1, min(int(tg), int(g)))
    if tg >= g:
        return int(g)
    return int(min(g, max(8, (tg // 8) * 8)))


def feature_quantification(features, cls_scores, pids, view_num, *, tile_groups=None):
    """features: (N, D), cls_scores: (N, C), pids: (N,); N % view_num == 0."""
    n, d = features.shape
    n2, c = cls_scores.shape
    assert n == n2, "features and cls_scores must share the batch dimension"
    assert n % view_num == 0, "batch size must be divisible by view_num"
    g = n // view_num

    # Free contiguous views: groups on sublanes, views folded into lanes.
    feat2 = features.reshape(g, view_num * d)
    cls2 = cls_scores.reshape(g, view_num * c)
    pids2 = pids.astype(jnp.int32).reshape(g, view_num)

    vmem_limit, budget = _vmem_limits()
    if tile_groups is None:
        tile_groups = _pick_tile_groups(
            g, view_num, d, c,
            features.dtype.itemsize, cls_scores.dtype.itemsize, budget)
        # If everything fits one block but the problem is big enough, split it
        # so megacore / v7x's second TensorCore actually gets work.
        half = pl.cdiv(g, 2)
        if tile_groups >= g and half >= 8:
            tile_groups = half
    tile_groups = _align_tile_groups(tile_groups, g)
    grid = (pl.cdiv(g, tile_groups),)   # ragged last tile is fine: padded groups
                                        # are self-contained, their writes masked.

    kernel = functools.partial(_fq_kernel, view_num, c, d)
    out2 = pl.pallas_call(
        kernel,
        out_shape=jax.ShapeDtypeStruct((g, view_num * d), features.dtype),
        grid=grid,
        in_specs=[
            pl.BlockSpec((tile_groups, view_num), lambda i: (i, 0)),        # pids
            pl.BlockSpec((tile_groups, view_num * d), lambda i: (i, 0)),    # features
            pl.BlockSpec((tile_groups, view_num * c), lambda i: (i, 0)),    # cls_scores
        ],
        out_specs=pl.BlockSpec((tile_groups, view_num * d), lambda i: (i, 0)),
        compiler_params=pltpu.CompilerParams(
            dimension_semantics=("parallel",),   # megacore / v7x 2-TC sharding
            vmem_limit_bytes=vmem_limit,
        ),
    )(pids2, feat2, cls2)
    # TODO(synk): for tiny-G / huge-D shapes add a second parallel grid axis over
    # D (weights depend only on rows) so both v7x TensorCores stream even when
    # fewer than 2 group blocks exist.
    return out2.reshape(n, d)


def _reference(features, cls_scores, pids, view_num):
    logp = jax.nn.log_softmax(cls_scores, axis=1)
    probs = logp[jnp.arange(features.shape[0]), pids]
    weights = jax.nn.softmax(probs.reshape(-1, view_num), axis=1).reshape(-1)
    return weights[:, None] * features


if __name__ == "__main__":
    key = jax.random.PRNGKey(0)

    cases = [
        # Toy single-block case; V*D folds to exactly 128 output lanes.
        dict(view_num=4, groups=2, C=16, D=32, tile_groups=None),
        # Multi-block grid with an 8-aligned tile and a ragged last block.
        dict(view_num=4, groups=11, C=24, D=64, tile_groups=8),
        # Odd sizes: V=3, C/D not nice multiples (unaligned lane slices).
        dict(view_num=3, groups=5, C=37, D=48, tile_groups=None),
    ]
    for cfg in cases:
        k1, k2, k3, key = jax.random.split(key, 4)
        n = cfg["groups"] * cfg["view_num"]
        features = jax.random.normal(k1, (n, cfg["D"]), dtype=jnp.float32)
        cls_scores = jax.random.normal(k2, (n, cfg["C"]), dtype=jnp.float32)
        pids = jax.random.randint(k3, (n,), 0, cfg["C"], dtype=jnp.int32)

        out = feature_quantification(
            features, cls_scores, pids, cfg["view_num"],
            tile_groups=cfg["tile_groups"])
        out = jax.block_until_ready(out)

        ref = _reference(features, cls_scores, pids, cfg["view_num"])
        np.testing.assert_allclose(np.asarray(out), np.asarray(ref),
                                   rtol=1e-5, atol=1e-5)

    print("KERNEL_OK")
</pallas_src>

<mosaic_0001>
module attributes {stable_mosaic.version = 11 : i64} {
  func.func @_fq_kernel(%arg0: i32, %arg1: memref<2x4xi32, #tpu.memory_space<vmem>>, %arg2: memref<2x128xf32, #tpu.memory_space<vmem>>, %arg3: memref<2x64xf32, #tpu.memory_space<vmem>>, %arg4: memref<2x128xf32, #tpu.memory_space<vmem>>) attributes {dimension_semantics = [#tpu.dimension_semantics<parallel>], iteration_bounds = array<i64: 1>, scalar_prefetch = 0 : i64, scratch_operands = 0 : i64, tpu.core_type = #tpu.core_type<tc>, window_params = [{transform_indices = @transform_0, window_bounds = array<i64: 2, 4>}, {transform_indices = @transform_1, window_bounds = array<i64: 2, 128>}, {transform_indices = @transform_2, window_bounds = array<i64: 2, 64>}, {transform_indices = @transform_3, window_bounds = array<i64: 2, 128>}]} {
    %c0 = arith.constant 0 : index
    %c0_0 = arith.constant 0 : index
    %0 = vector.load %arg3[%c0, %c0_0] : memref<2x64xf32, #tpu.memory_space<vmem>>, vector<2x64xf32>
    %1 = tpu.iota {dimensions = array<i32: 1>} : vector<1x16xi32>
    %2 = vector.extract_strided_slice %0 {offsets = [0, 0], sizes = [2, 16], strides = [1, 1]} : vector<2x64xf32> to vector<2x16xf32>
    %cst = arith.constant dense<0xFF800000> : vector<2xf32>
    %3 = vector.multi_reduction <maximumf>, %2, %cst [1] : vector<2x16xf32> to vector<2xf32>
    %4 = vector.shape_cast %3 : vector<2xf32> to vector<2x1xf32>
    %5 = vector.broadcast %4 : vector<2x1xf32> to vector<2x16xf32>
    %6 = arith.subf %2, %5 : vector<2x16xf32>
    %7 = math.exp %6 : vector<2x16xf32>
    %cst_1 = arith.constant dense<0.000000e+00> : vector<2xf32>
    %8 = vector.multi_reduction <add>, %7, %cst_1 [1] : vector<2x16xf32> to vector<2xf32>
    %9 = vector.shape_cast %8 : vector<2xf32> to vector<2x1xf32>
    %10 = math.log %9 : vector<2x1xf32>
    %c0_2 = arith.constant 0 : index
    %c0_3 = arith.constant 0 : index
    %11 = vector.load %arg1[%c0_2, %c0_3] : memref<2x4xi32, #tpu.memory_space<vmem>>, vector<2x1xi32>
    %12 = vector.broadcast %1 : vector<1x16xi32> to vector<2x16xi32>
    %13 = vector.broadcast %11 : vector<2x1xi32> to vector<2x16xi32>
    %14 = arith.cmpi eq, %12, %13 : vector<2x16xi32>
    %cst_4 = arith.constant 0.000000e+00 : f32
    %15 = vector.broadcast %cst_4 : f32 to vector<2x16xf32>
    %16 = arith.select %14, %6, %15 : vector<2x16xi1>, vector<2x16xf32>
    %cst_5 = arith.constant dense<0.000000e+00> : vector<2xf32>
    %17 = vector.multi_reduction <add>, %16, %cst_5 [1] : vector<2x16xf32> to vector<2xf32>
    %18 = vector.shape_cast %17 : vector<2xf32> to vector<2x1xf32>
    %19 = arith.subf %18, %10 : vector<2x1xf32>
    %20 = vector.extract_strided_slice %0 {offsets = [0, 16], sizes = [2, 16], strides = [1, 1]} : vector<2x64xf32> to vector<2x16xf32>
    %cst_6 = arith.constant dense<0xFF800000> : vector<2xf32>
    %21 = vector.multi_reduction <maximumf>, %20, %cst_6 [1] : vector<2x16xf32> to vector<2xf32>
    %22 = vector.shape_cast %21 : vector<2xf32> to vector<2x1xf32>
    %23 = vector.broadcast %22 : vector<2x1xf32> to vector<2x16xf32>
    %24 = arith.subf %20, %23 : vector<2x16xf32>
    %25 = math.exp %24 : vector<2x16xf32>
    %cst_7 = arith.constant dense<0.000000e+00> : vector<2xf32>
    %26 = vector.multi_reduction <add>, %25, %cst_7 [1] : vector<2x16xf32> to vector<2xf32>
    %27 = vector.shape_cast %26 : vector<2xf32> to vector<2x1xf32>
    %28 = math.log %27 : vector<2x1xf32>
    %c0_8 = arith.constant 0 : index
    %c1 = arith.constant 1 : index
    %29 = vector.load %arg1[%c0_8, %c1] : memref<2x4xi32, #tpu.memory_space<vmem>>, vector<2x1xi32>
    %30 = vector.broadcast %1 : vector<1x16xi32> to vector<2x16xi32>
    %31 = vector.broadcast %29 : vector<2x1xi32> to vector<2x16xi32>
    %32 = arith.cmpi eq, %30, %31 : vector<2x16xi32>
    %cst_9 = arith.constant 0.000000e+00 : f32
    %33 = vector.broadcast %cst_9 : f32 to vector<2x16xf32>
    %34 = arith.select %32, %24, %33 : vector<2x16xi1>, vector<2x16xf32>
    %cst_10 = arith.constant dense<0.000000e+00> : vector<2xf32>
    %35 = vector.multi_reduction <add>, %34, %cst_10 [1] : vector<2x16xf32> to vector<2xf32>
    %36 = vector.shape_cast %35 : vector<2xf32> to vector<2x1xf32>
    %37 = arith.subf %36, %28 : vector<2x1xf32>
    %38 = vector.extract_strided_slice %0 {offsets = [0, 32], sizes = [2, 16], strides = [1, 1]} : vector<2x64xf32> to vector<2x16xf32>
    %cst_11 = arith.constant dense<0xFF800000> : vector<2xf32>
    %39 = vector.multi_reduction <maximumf>, %38, %cst_11 [1] : vector<2x16xf32> to vector<2xf32>
    %40 = vector.shape_cast %39 : vector<2xf32> to vector<2x1xf32>
    %41 = vector.broadcast %40 : vector<2x1xf32> to vector<2x16xf32>
    %42 = arith.subf %38, %41 : vector<2x16xf32>
    %43 = math.exp %42 : vector<2x16xf32>
    %cst_12 = arith.constant dense<0.000000e+00> : vector<2xf32>
    %44 = vector.multi_reduction <add>, %43, %cst_12 [1] : vector<2x16xf32> to vector<2xf32>
    %45 = vector.shape_cast %44 : vector<2xf32> to vector<2x1xf32>
    %46 = math.log %45 : vector<2x1xf32>
    %c0_13 = arith.constant 0 : index
    %c2 = arith.constant 2 : index
    %47 = vector.load %arg1[%c0_13, %c2] : memref<2x4xi32, #tpu.memory_space<vmem>>, vector<2x1xi32>
    %48 = vector.broadcast %1 : vector<1x16xi32> to vector<2x16xi32>
    %49 = vector.broadcast %47 : vector<2x1xi32> to vector<2x16xi32>
    %50 = arith.cmpi eq, %48, %49 : vector<2x16xi32>
    %cst_14 = arith.constant 0.000000e+00 : f32
    %51 = vector.broadcast %cst_14 : f32 to vector<2x16xf32>
    %52 = arith.select %50, %42, %51 : vector<2x16xi1>, vector<2x16xf32>
    %cst_15 = arith.constant dense<0.000000e+00> : vector<2xf32>
    %53 = vector.multi_reduction <add>, %52, %cst_15 [1] : vector<2x16xf32> to vector<2xf32>
    %54 = vector.shape_cast %53 : vector<2xf32> to vector<2x1xf32>
    %55 = arith.subf %54, %46 : vector<2x1xf32>
    %56 = vector.extract_strided_slice %0 {offsets = [0, 48], sizes = [2, 16], strides = [1, 1]} : vector<2x64xf32> to vector<2x16xf32>
    %cst_16 = arith.constant dense<0xFF800000> : vector<2xf32>
    %57 = vector.multi_reduction <maximumf>, %56, %cst_16 [1] : vector<2x16xf32> to vector<2xf32>
    %58 = vector.shape_cast %57 : vector<2xf32> to vector<2x1xf32>
    %59 = vector.broadcast %58 : vector<2x1xf32> to vector<2x16xf32>
    %60 = arith.subf %56, %59 : vector<2x16xf32>
    %61 = math.exp %60 : vector<2x16xf32>
    %cst_17 = arith.constant dense<0.000000e+00> : vector<2xf32>
    %62 = vector.multi_reduction <add>, %61, %cst_17 [1] : vector<2x16xf32> to vector<2xf32>
    %63 = vector.shape_cast %62 : vector<2xf32> to vector<2x1xf32>
    %64 = math.log %63 : vector<2x1xf32>
    %c0_18 = arith.constant 0 : index
    %c3 = arith.constant 3 : index
    %65 = vector.load %arg1[%c0_18, %c3] : memref<2x4xi32, #tpu.memory_space<vmem>>, vector<2x1xi32>
    %66 = vector.broadcast %1 : vector<1x16xi32> to vector<2x16xi32>
    %67 = vector.broadcast %65 : vector<2x1xi32> to vector<2x16xi32>
    %68 = arith.cmpi eq, %66, %67 : vector<2x16xi32>
    %cst_19 = arith.constant 0.000000e+00 : f32
    %69 = vector.broadcast %cst_19 : f32 to vector<2x16xf32>
    %70 = arith.select %68, %60, %69 : vector<2x16xi1>, vector<2x16xf32>
    %cst_20 = arith.constant dense<0.000000e+00> : vector<2xf32>
    %71 = vector.multi_reduction <add>, %70, %cst_20 [1] : vector<2x16xf32> to vector<2xf32>
    %72 = vector.shape_cast %71 : vector<2xf32> to vector<2x1xf32>
    %73 = arith.subf %72, %64 : vector<2x1xf32>
    %74 = arith.maximumf %19, %37 : vector<2x1xf32>
    %75 = arith.maximumf %74, %55 : vector<2x1xf32>
    %76 = arith.maximumf %75, %73 : vector<2x1xf32>
    %77 = arith.subf %19, %76 : vector<2x1xf32>
    %78 = math.exp %77 : vector<2x1xf32>
    %79 = arith.subf %37, %76 : vector<2x1xf32>
    %80 = math.exp %79 : vector<2x1xf32>
    %81 = arith.subf %55, %76 : vector<2x1xf32>
    %82 = math.exp %81 : vector<2x1xf32>
    %83 = arith.subf %73, %76 : vector<2x1xf32>
    %84 = math.exp %83 : vector<2x1xf32>
    %85 = arith.addf %78, %80 : vector<2x1xf32>
    %86 = arith.addf %85, %82 : vector<2x1xf32>
    %87 = arith.addf %86, %84 : vector<2x1xf32>
    %cst_21 = arith.constant 1.000000e+00 : f32
    %88 = vector.broadcast %cst_21 : f32 to vector<2x1xf32>
    %89 = arith.divf %88, %87 : vector<2x1xf32>
    %90 = arith.mulf %78, %89 : vector<2x1xf32>
    %91 = arith.mulf %80, %89 : vector<2x1xf32>
    %92 = arith.mulf %82, %89 : vector<2x1xf32>
    %93 = arith.mulf %84, %89 : vector<2x1xf32>
    %94 = tpu.iota {dimensions = array<i32: 1>} : vector<1x128xi32>
    %c96_i32 = arith.constant 96 : i32
    %95 = vector.broadcast %c96_i32 : i32 to vector<1x128xi32>
    %96 = arith.cmpi slt, %94, %95 : vector<1x128xi32>
    %97 = vector.shape_cast %96 : vector<1x128xi1> to vector<1x128xi1>
    %98 = vector.broadcast %97 : vector<1x128xi1> to vector<2x128xi1>
    %99 = vector.shape_cast %92 : vector<2x1xf32> to vector<2x1xf32>
    %100 = vector.broadcast %99 : vector<2x1xf32> to vector<2x128xf32>
    %101 = vector.shape_cast %93 : vector<2x1xf32> to vector<2x1xf32>
    %102 = vector.broadcast %101 : vector<2x1xf32> to vector<2x128xf32>
    %103 = arith.select %98, %100, %102 : vector<2x128xi1>, vector<2x128xf32>
    %c64_i32 = arith.constant 64 : i32
    %104 = vector.broadcast %c64_i32 : i32 to vector<1x128xi32>
    %105 = arith.cmpi slt, %94, %104 : vector<1x128xi32>
    %106 = vector.shape_cast %105 : vector<1x128xi1> to vector<1x128xi1>
    %107 = vector.broadcast %106 : vector<1x128xi1> to vector<2x128xi1>
    %108 = vector.shape_cast %91 : vector<2x1xf32> to vector<2x1xf32>
    %109 = vector.broadcast %108 : vector<2x1xf32> to vector<2x128xf32>
    %110 = arith.select %107, %109, %103 : vector<2x128xi1>, vector<2x128xf32>
    %c32_i32 = arith.constant 32 : i32
    %111 = vector.broadcast %c32_i32 : i32 to vector<1x128xi32>
    %112 = arith.cmpi slt, %94, %111 : vector<1x128xi32>
    %113 = vector.shape_cast %112 : vector<1x128xi1> to vector<1x128xi1>
    %114 = vector.broadcast %113 : vector<1x128xi1> to vector<2x128xi1>
    %115 = vector.shape_cast %90 : vector<2x1xf32> to vector<2x1xf32>
    %116 = vector.broadcast %115 : vector<2x1xf32> to vector<2x128xf32>
    %117 = arith.select %114, %116, %110 : vector<2x128xi1>, vector<2x128xf32>
    %c0_22 = arith.constant 0 : index
    %c0_23 = arith.constant 0 : index
    %118 = vector.load %arg2[%c0_22, %c0_23] : memref<2x128xf32, #tpu.memory_space<vmem>>, vector<2x128xf32>
    %119 = arith.mulf %117, %118 : vector<2x128xf32>
    %c0_24 = arith.constant 0 : index
    %c0_25 = arith.constant 0 : index
    %120 = vector.load %arg4[%c0_24, %c0_25] : memref<2x128xf32, #tpu.memory_space<vmem>>, vector<2x128xf32>
    tpu.vector_store %arg4[%c0_24, %c0_25], %119 {strides = array<i32>} : memref<2x128xf32, #tpu.memory_space<vmem>>, vector<2x128xf32>,
    return
  }
  func.func @transform_0(%arg0: i32) -> (i32, i32) {
    %c0_i32 = arith.constant 0 : i32
    %c0_i32_0 = arith.constant 0 : i32
    return %arg0, %c0_i32 : i32, i32
  }
  func.func @transform_1(%arg0: i32) -> (i32, i32) {
    %c0_i32 = arith.constant 0 : i32
    %c0_i32_0 = arith.constant 0 : i32
    return %arg0, %c0_i32 : i32, i32
  }
  func.func @transform_2(%arg0: i32) -> (i32, i32) {
    %c0_i32 = arith.constant 0 : i32
    %c0_i32_0 = arith.constant 0 : i32
    return %arg0, %c0_i32 : i32, i32
  }
  func.func @transform_3(%arg0: i32) -> (i32, i32) {
    %c0_i32 = arith.constant 0 : i32
    %c0_i32_0 = arith.constant 0 : i32
    return %arg0, %c0_i32 : i32, i32
  }
}

</mosaic_0001>

<llo_original>
// kernel: tpu_custom_call.1
$region0: #{tpu_custom_call.1}
  #allocation0 [shape = 'u32[]', space=smem, size = 0x4, offset = 0x4, fixed_abs, tag = 'smem constant byte address 0x4 - core index']
  #allocation1 [shape = 'u32[144,128]{1,0:T(1,128)}', space=vmem, size = 0x12000, scoped, tag = 'internal scratch']
  %s0 = inlined_call_operand.hbm [shape: s32[2,4], index: 0, kind: input, shape index: {}]
  %s1 = inlined_call_operand.hbm [shape: f32[2,128], index: 1, kind: input, shape index: {}]
  %s2 = inlined_call_operand.vmem [shape: f32[2,64], index: 2, kind: input, shape index: {}]
  %s3 = inlined_call_operand.hbm [shape: f32[2,128], index: 3, kind: output, shape index: {}]
  %s4 = sld [smem:[#allocation0]]
  $region30: #{tpu_custom_call.1} parent=0
    _
  %s6 = ssub.s32 1, %s4
  %s7 = scalar_select 0, %s6, %s4
  $region1: #{tpu_custom_call.1} parent=0
    #allocation2 [shape = 'u8[1024]{0}', space=vmem, size = 0x400, scoped, tag = 'input window, operand 0, single buffered']
    #allocation3 [shape = 's32[1]{0}', space=sflag, size = 0x4, scoped, tag = 'scoped memory for tpu_custom_call.1']
    #allocation4 [shape = 's32[1]{0}', space=sflag, size = 0x4, scoped, tag = 'scoped memory for tpu_custom_call.1']
    #allocation5 [shape = 'u8[1024]{0}', space=vmem, size = 0x400, scoped, tag = 'input window, operand 1, single buffered']
    #allocation6 [shape = 's32[1]{0}', space=sflag, size = 0x4, scoped, tag = 'scoped memory for tpu_custom_call.1']
    #allocation7 [shape = 'u8[1024]{0}', space=vmem, size = 0x400, scoped, tag = 'output window, operand 0, single buffered']
    %8 = vsyncpa [#allocation3], 0
    %9 = vsyncpa [#allocation6], 0
    %10 = vsyncpa [#allocation4], 0
    // Predicated region
    $region2: #{tpu_custom_call.1} parent=1 // pred_check
      _
    $region3: #{tpu_custom_call.1} parent=1 // pred_check_branch
      %12 = sbr.rel (0) target = $region5
    $region4: #{tpu_custom_call.1} parent=1 // pred_region
      %s14 = ssub.s32 32, 32
      %15 = vsyncadd [#allocation3], %s14
      %s17 = sshll.u32 [#allocation2], 4
      %s18 = int_to_ptr.vmem [resolvable:$true] %s17
      %20 = dma.hbm_to_vmem [thread:$0]  %s0, 32, %s18, [#allocation3]
    $region5: #{tpu_custom_call.1} parent=1 // pred_fallthru
      _
    // Predicated region
    $region6: #{tpu_custom_call.1} parent=1 // pred_check
      _
    $region7: #{tpu_custom_call.1} parent=1 // pred_check_branch
      %22 = sbr.rel (0) target = $region9
    $region8: #{tpu_custom_call.1} parent=1 // pred_region
      %s24 = ssub.s32 32, 32
      %25 = vsyncadd [#allocation6], %s24
      %s27 = sshll.u32 [#allocation5], 4
      %s28 = int_to_ptr.vmem [resolvable:$true] %s27
      %30 = dma.hbm_to_vmem [thread:$0]  %s1, 32, %s28, [#allocation6]
    $region9: #{tpu_custom_call.1} parent=1 // pred_fallthru
      _
    // Predicated region
    $region10: #{tpu_custom_call.1} parent=1 // pred_check
      _
    $region11: #{tpu_custom_call.1} parent=1 // pred_check_branch
      %32 = sbr.rel (0) target = $region13
    $region12: #{tpu_custom_call.1} parent=1 // pred_region
      _
    $region13: #{tpu_custom_call.1} parent=1 // pred_fallthru
      _
    // Predicated region
    $region14: #{tpu_custom_call.1} parent=1 // pred_check
      _
    $region15: #{tpu_custom_call.1} parent=1 // pred_check_branch
      %34 = sbr.rel (0) target = $region17
    $region16: #{tpu_custom_call.1} parent=1 // pred_region
      %35 = dma.done [#allocation3], 32
    $region17: #{tpu_custom_call.1} parent=1 // pred_fallthru
      _
    // Predicated region
    $region18: #{tpu_custom_call.1} parent=1 // pred_check
      _
    $region19: #{tpu_custom_call.1} parent=1 // pred_check_branch
      %37 = sbr.rel (0) target = $region21
    $region20: #{tpu_custom_call.1} parent=1 // pred_region
      %38 = dma.done [#allocation6], 32
    $region21: #{tpu_custom_call.1} parent=1 // pred_fallthru
      _
    %v39 = vld [vmem:[%s2] sm:$0x3]
    %v40 = vlaneseq
    %v41 = vand.u32 %v40, 127
    %vm42 = vcmask 123904
    %v43 = vsel %vm42, %v39, -inf
    %44 = vmax.xlane.f32.xlu0 %v43
    %v45 = vpop.xlane.xlu0 %44
    %v46 = vsub.f32 %v39, %v45
    %v47 = vmul.f32 %v46, 1.442695
    %v48 = vpow.pop %v47
    %v49 = vsel %vm42, %v48, 0.0
    %50 = vadd.xlane.f32.xlu0 %v49
    %v51 = vpop.xlane.xlu0 %50
    %v52 = vlog2.pop %v51
    %v53 = vmul.f32 %v52, 0.6931472
    %v54 = vld [vmem:[#allocation2] sm:$0x3]
    %55 = vset.pattern.permute.xlu0 0
    %56 = vperm.xlu0 %55, %v54
    %v57 = vpop.permute.xlu0 %56
    %vm58 = vcmp.eq.s32.totalorder %v41, %v57
    %v59 = vsel %vm58, %v46, 0.0
    %v60 = vsel %vm42, %v59, 0.0
    %61 = vadd.xlane.f32.xlu0 %v60
    %v62 = vpop.xlane.xlu0 %61
    %v63 = vsub.f32 %v62, %v53
    %vm64 = vcmask 255104
    %v65 = vsel %vm64, %v39, -inf
    %66 = vmax.xlane.f32.xlu0 %v65
    %v67 = vpop.xlane.xlu0 %66
    %v68 = vsub.f32 %v39, %v67
    %v69 = vmul.f32 %v68, 1.442695
    %v70 = vpow.pop %v69
    %72 = vrot.lane.b32.xlu0 %v70, 112
    %v73 = vpop.permute.xlu0 %72
    %v75 = vsel %vm42, %v73, 0.0
    %76 = vadd.xlane.f32.xlu0 %v75
    %v77 = vpop.xlane.xlu0 %76
    %v78 = vlog2.pop %v77
    %v79 = vmul.f32 %v78, 0.6931472
    %80 = vset.pattern.permute.xlu0 1
    %81 = vperm.xlu0 %80, %v54
    %v82 = vpop.permute.xlu0 %81
    %vm83 = vcmp.eq.s32.totalorder %v41, %v82
    %85 = vrot.lane.b32.xlu0 %v68, 112
    %v86 = vpop.permute.xlu0 %85
    %v88 = vsel %vm83, %v86, 0.0
    %v89 = vsel %vm42, %v88, 0.0
    %90 = vadd.xlane.f32.xlu0 %v89
    %v91 = vpop.xlane.xlu0 %90
    %v92 = vsub.f32 %v91, %v79
    %vm93 = vcmask 386304
    %v94 = vsel %vm93, %v39, -inf
    %95 = vmax.xlane.f32.xlu0 %v94
    %v96 = vpop.xlane.xlu0 %95
    %v97 = vsub.f32 %v39, %v96
    %v98 = vmul.f32 %v97, 1.442695
    %v99 = vpow.pop %v98
    %101 = vrot.lane.b32.xlu0 %v99, 96
    %v102 = vpop.permute.xlu0 %101
    %v104 = vsel %vm42, %v102, 0.0
    %105 = vadd.xlane.f32.xlu0 %v104
    %v106 = vpop.xlane.xlu0 %105
    %v107 = vlog2.pop %v106
    %v108 = vmul.f32 %v107, 0.6931472
    %109 = vset.pattern.permute.xlu0 2
    %110 = vperm.xlu0 %109, %v54
    %v111 = vpop.permute.xlu0 %110
    %vm112 = vcmp.eq.s32.totalorder %v41, %v111
    %114 = vrot.lane.b32.xlu0 %v97, 96
    %v115 = vpop.permute.xlu0 %114
    %v117 = vsel %vm112, %v115, 0.0
    %v118 = vsel %vm42, %v117, 0.0
    %119 = vadd.xlane.f32.xlu0 %v118
    %v120 = vpop.xlane.xlu0 %119
    %v121 = vsub.f32 %v120, %v108
    %vm122 = vcmask 517504
    %v123 = vsel %vm122, %v39, -inf
    %124 = vmax.xlane.f32.xlu0 %v123
    %v125 = vpop.xlane.xlu0 %124
    %v126 = vsub.f32 %v39, %v125
    %v127 = vmul.f32 %v126, 1.442695
    %v128 = vpow.pop %v127
    %130 = vrot.lane.b32.xlu0 %v128, 80
    %v131 = vpop.permute.xlu0 %130
    %v133 = vsel %vm42, %v131, 0.0
    %134 = vadd.xlane.f32.xlu0 %v133
    %v135 = vpop.xlane.xlu0 %134
    %v136 = vlog2.pop %v135
    %v137 = vmul.f32 %v136, 0.6931472
    %138 = vset.pattern.permute.xlu0 3
    %139 = vperm.xlu0 %138, %v54
    %v140 = vpop.permute.xlu0 %139
    %vm141 = vcmp.eq.s32.totalorder %v41, %v140
    %143 = vrot.lane.b32.xlu0 %v126, 80
    %v144 = vpop.permute.xlu0 %143
    %v146 = vsel %vm141, %v144, 0.0
    %v147 = vsel %vm42, %v146, 0.0
    %148 = vadd.xlane.f32.xlu0 %v147
    %v149 = vpop.xlane.xlu0 %148
    %v150 = vsub.f32 %v149, %v137
    %v151 = vmax.f32 %v63, %v92
    %v152 = vmax.f32 %v151, %v121
    %v153 = vmax.f32 %v152, %v150
    %v154 = vsub.f32 %v63, %v153
    %v155 = vmul.f32 %v154, 1.442695
    %v156 = vpow.pop %v155
    %v157 = vsub.f32 %v92, %v153
    %v158 = vmul.f32 %v157, 1.442695
    %v159 = vpow.pop %v158
    %v160 = vsub.f32 %v121, %v153
    %v161 = vmul.f32 %v160, 1.442695
    %v162 = vpow.pop %v161
    %v163 = vsub.f32 %v150, %v153
    %v164 = vmul.f32 %v163, 1.442695
    %v165 = vpow.pop %v164
    %v166 = vadd.f32 %v156, %v159
    %v167 = vadd.f32 %v166, %v162
    %v168 = vadd.f32 %v167, %v165
    %v169 = vrcp.pop %v168
    %v170 = vmul.f32 1.0, %v169
    %v171 = vmul.f32 %v156, %v170
    %v172 = vmul.f32 %v159, %v170
    %v173 = vmul.f32 %v162, %v170
    %v174 = vmul.f32 %v165, %v170
    %vm175 = vcmp.lt.s32.totalorder %v41, 96
    %v176 = vsel %vm175, 1, 0
    %vm177 = vcmp.eq.s32.totalorder %v176, 1
    %v178 = vsel %vm177, %v173, %v174
    %vm179 = vcmp.lt.s32.totalorder %v41, 64
    %v180 = vsel %vm179, 1, 0
    %vm181 = vcmp.eq.s32.totalorder %v180, 1
    %v182 = vsel %vm181, %v172, %v178
    %vm183 = vcmp.lt.s32.totalorder %v41, 32
    %v184 = vsel %vm183, 1, 0
    %vm185 = vcmp.eq.s32.totalorder %v184, 1
    %v186 = vsel %vm185, %v171, %v182
    %v187 = vld [vmem:[#allocation5] sm:$0x3]
    %v188 = vmul.f32 %v186, %v187
    %189 = vst [vmem:[#allocation7] sm:$0x3] %v188
    // Predicated region
    $region22: #{tpu_custom_call.1} parent=1 // pred_check
      _
    $region23: #{tpu_custom_call.1} parent=1 // pred_check_branch
      %191 = sbr.rel (0) target = $region25
    $region24: #{tpu_custom_call.1} parent=1 // pred_region
      %s193 = ssub.s32 32, 32
      %194 = vsyncadd [#allocation4], %s193
      %s196 = sshll.u32 [#allocation7], 4
      %s197 = int_to_ptr.vmem [resolvable:$true] %s196
      %199 = dma.vmem_to_hbm [thread:$0]  %s197, 32, %s3, [#allocation4]
    $region25: #{tpu_custom_call.1} parent=1 // pred_fallthru
      _
    // Predicated region
    $region26: #{tpu_custom_call.1} parent=1 // pred_check
      _
    $region27: #{tpu_custom_call.1} parent=1 // pred_check_branch
      %201 = sbr.rel (0) target = $region29
    $region28: #{tpu_custom_call.1} parent=1 // pred_region
      %202 = dma.done [#allocation4], 32
    $region29: #{tpu_custom_call.1} parent=1 // pred_fallthru
      _
    %203 = vsyncpa [#allocation3], 1
    %204 = vsyncpa [#allocation6], 1
    %205 = vsyncpa [#allocation4], 1

</llo_original>
